<compile_context>
chip_gen: v6e
topology: v6e:2x2x1
jax: 0.10.0
libtpu: 0.0.40
codegen_flags: <defaults>
</compile_context>

<pallas_src>
import jax
import jax.numpy as jnp
from jax.experimental import pallas as pl
from jax.experimental.pallas import tpu as pltpu


# ---------------------------------------------------------------------------
# Kernels
# ---------------------------------------------------------------------------
def _dyn_softsign_affine_kernel(alpha_ref, x_ref, w_ref, b_ref, o_ref):
    # alpha_ref: SMEM scalar-prefetch ref, shape (1,)
    # x_ref:     VMEM (tile_rows, hidden)
    # w_ref/b_ref: VMEM (1, hidden) -> broadcast over rows
    alpha = alpha_ref[0]
    z = alpha * x_ref[...]
    # Multiply by reciprocal instead of dividing: the reciprocal runs on the
    # EUP slot, keeping VALU issue slots free for the remaining elementwise work.
    s = z * pl.reciprocal(1.0 + jnp.abs(z), approx=False)
    o_ref[...] = w_ref[...] * s + b_ref[...]


def _dyn_softsign_plain_kernel(alpha_ref, x_ref, o_ref):
    alpha = alpha_ref[0]
    z = alpha * x_ref[...]
    o_ref[...] = z * pl.reciprocal(1.0 + jnp.abs(z), approx=False)


# ---------------------------------------------------------------------------
# Tiling heuristics
# ---------------------------------------------------------------------------
def _round_up(v, m):
    return (v + m - 1) // m * m


def _pick_tile_rows(rows, hidden, itemsize):
    """Row-tile size that keeps per-step VMEM small and pipelining alive.

    Target ~2 MiB per tile buffer so 2x(double-buffered input) +
    2x(double-buffered output) ~= 8 MiB, comfortably inside the smallest
    scoped-VMEM defaults (16 MiB v5e, 32 MiB v6e/v7x, 64 MiB physical v7x)
    without raising vmem_limit_bytes.  Cap at 2048 rows so real-sized inputs
    get many grid steps (pipelining + megacore sharding on v7x).
    """
    budget_rows = max(8, (2 * 1024 * 1024) // (itemsize * hidden))
    tile = min(2048, budget_rows)
    tile = max(8, (tile // 8) * 8)          # keep sublane-aligned
    tile = min(tile, _round_up(rows, 8))    # never exceed the problem size
    return tile


# ---------------------------------------------------------------------------
# Wrapper
# ---------------------------------------------------------------------------
def dynamic_softsign(x, alpha, weight=None, bias=None, *, tile_rows=None):
    """x: (..., hidden). alpha: (1,). weight/bias: (hidden,) or None."""
    orig_shape = x.shape
    hidden = orig_shape[-1]
    rows = 1
    for d in orig_shape[:-1]:
        rows *= d
    x2 = x.reshape(rows, hidden)

    # TODO(synk): if hidden is not a multiple of 128 (lane-sparse output),
    # fold rows into the lane axis in this wrapper to avoid masked stores.

    if tile_rows is None:
        tile_rows = _pick_tile_rows(rows, hidden, jnp.dtype(x.dtype).itemsize)
    grid = (pl.cdiv(rows, tile_rows),)   # tail block handled by Pallas masking

    compiler_params = pltpu.CompilerParams(
        dimension_semantics=("parallel",))

    if weight is not None:
        w2 = weight.reshape(1, hidden).astype(x.dtype)
        b2 = bias.reshape(1, hidden).astype(x.dtype)
        out = pl.pallas_call(
            _dyn_softsign_affine_kernel,
            out_shape=jax.ShapeDtypeStruct((rows, hidden), x.dtype),
            grid_spec=pltpu.PrefetchScalarGridSpec(
                num_scalar_prefetch=1,   # alpha -> SMEM before the grid runs
                grid=grid,
                in_specs=[
                    pl.BlockSpec((tile_rows, hidden), lambda i, alpha_ref: (i, 0)),
                    pl.BlockSpec((1, hidden), lambda i, alpha_ref: (0, 0)),
                    pl.BlockSpec((1, hidden), lambda i, alpha_ref: (0, 0)),
                ],
                out_specs=pl.BlockSpec((tile_rows, hidden),
                                       lambda i, alpha_ref: (i, 0)),
            ),
            compiler_params=compiler_params,
        )(alpha, x2, w2, b2)
    else:
        out = pl.pallas_call(
            _dyn_softsign_plain_kernel,
            out_shape=jax.ShapeDtypeStruct((rows, hidden), x.dtype),
            grid_spec=pltpu.PrefetchScalarGridSpec(
                num_scalar_prefetch=1,
                grid=grid,
                in_specs=[
                    pl.BlockSpec((tile_rows, hidden), lambda i, alpha_ref: (i, 0)),
                ],
                out_specs=pl.BlockSpec((tile_rows, hidden),
                                       lambda i, alpha_ref: (i, 0)),
            ),
            compiler_params=compiler_params,
        )(alpha, x2)

    return out.reshape(orig_shape)


# ---------------------------------------------------------------------------
# Self-test
# ---------------------------------------------------------------------------
def _reference(x, alpha, weight=None, bias=None):
    z = alpha[0] * x
    s = z / (1.0 + jnp.abs(z))
    if weight is not None:
        return weight * s + bias
    return s


if __name__ == "__main__":
    batch, seq, hidden = 2, 8, 128
    normalized_shape = hidden
    alpha_init_value = 0.5

    key = jax.random.PRNGKey(0)
    x = jax.random.normal(key, (batch, seq, hidden), dtype=jnp.float32)

    # Parameter init matching nn.Module.__init__ (then perturbed so the
    # affine path is actually exercised).
    alpha = jnp.ones((1,), dtype=jnp.float32) * alpha_init_value
    weight = jnp.ones((normalized_shape,), dtype=jnp.float32)
    bias = jnp.zeros((normalized_shape,), dtype=jnp.float32)
    kw, kb = jax.random.split(jax.random.PRNGKey(1))
    weight = weight + 0.1 * jax.random.normal(kw, (normalized_shape,), jnp.float32)
    bias = bias + 0.1 * jax.random.normal(kb, (normalized_shape,), jnp.float32)

    # 1) elementwise_affine = True
    out = dynamic_softsign(x, alpha, weight, bias)
    out = jax.block_until_ready(out)
    ref = _reference(x, alpha, weight, bias)
    assert out.shape == x.shape and out.dtype == x.dtype
    assert jnp.allclose(out, ref, atol=1e-6, rtol=1e-6)

    # 2) elementwise_affine = False
    out2 = dynamic_softsign(x, alpha)
    out2 = jax.block_until_ready(out2)
    ref2 = _reference(x, alpha)
    assert jnp.allclose(out2, ref2, atol=1e-6, rtol=1e-6)

    # 3) non-divisible row count (batch*seq = 15) with a small forced tile,
    #    exercising the cdiv tail block + multi-step grid path.
    x3 = jax.random.normal(jax.random.PRNGKey(2), (3, 5, hidden), jnp.float32)
    out3 = dynamic_softsign(x3, alpha, weight, bias, tile_rows=8)
    out3 = jax.block_until_ready(out3)
    ref3 = _reference(x3, alpha, weight, bias)
    assert jnp.allclose(out3, ref3, atol=1e-6, rtol=1e-6)

    print("KERNEL_OK")
</pallas_src>

<mosaic_0001>
module attributes {stable_mosaic.version = 11 : i64} {
  func.func @_dyn_softsign_affine_kernel(%arg0: i32, %arg1: memref<1xf32, #tpu.memory_space<smem>>, %arg2: memref<16x128xf32, #tpu.memory_space<vmem>>, %arg3: memref<1x128xf32, #tpu.memory_space<vmem>>, %arg4: memref<1x128xf32, #tpu.memory_space<vmem>>, %arg5: memref<16x128xf32, #tpu.memory_space<vmem>>) attributes {dimension_semantics = [#tpu.dimension_semantics<parallel>], iteration_bounds = array<i64: 1>, scalar_prefetch = 1 : i64, scratch_operands = 0 : i64, tpu.core_type = #tpu.core_type<tc>, window_params = [{transform_indices = @transform_0, window_bounds = array<i64: 16, 128>}, {pipeline_mode = #tpu.pipeline_mode<synchronous>, transform_indices = @transform_1, window_bounds = array<i64: 1, 128>}, {pipeline_mode = #tpu.pipeline_mode<synchronous>, transform_indices = @transform_2, window_bounds = array<i64: 1, 128>}, {transform_indices = @transform_3, window_bounds = array<i64: 16, 128>}]} {
    %c0 = arith.constant 0 : index
    %0 = memref.load %arg1[%c0] : memref<1xf32, #tpu.memory_space<smem>>
    %c0_0 = arith.constant 0 : index
    %c0_1 = arith.constant 0 : index
    %1 = vector.load %arg2[%c0_0, %c0_1] : memref<16x128xf32, #tpu.memory_space<vmem>>, vector<16x128xf32>
    %2 = vector.broadcast %0 : f32 to vector<16x128xf32>
    %3 = arith.mulf %2, %1 : vector<16x128xf32>
    %4 = math.absf %3 : vector<16x128xf32>
    %cst = arith.constant 1.000000e+00 : f32
    %5 = vector.broadcast %cst : f32 to vector<16x128xf32>
    %6 = arith.addf %5, %4 : vector<16x128xf32>
    %7 = tpu.reciprocal %6 : vector<16x128xf32> -> vector<16x128xf32>
    %8 = arith.mulf %3, %7 : vector<16x128xf32>
    %c0_2 = arith.constant 0 : index
    %c0_3 = arith.constant 0 : index
    %9 = vector.load %arg3[%c0_2, %c0_3] : memref<1x128xf32, #tpu.memory_space<vmem>>, vector<1x128xf32>
    %10 = vector.broadcast %9 : vector<1x128xf32> to vector<16x128xf32>
    %11 = arith.mulf %10, %8 : vector<16x128xf32>
    %c0_4 = arith.constant 0 : index
    %c0_5 = arith.constant 0 : index
    %12 = vector.load %arg4[%c0_4, %c0_5] : memref<1x128xf32, #tpu.memory_space<vmem>>, vector<1x128xf32>
    %13 = vector.broadcast %12 : vector<1x128xf32> to vector<16x128xf32>
    %14 = arith.addf %11, %13 : vector<16x128xf32>
    %c0_6 = arith.constant 0 : index
    %c0_7 = arith.constant 0 : index
    %15 = vector.load %arg5[%c0_6, %c0_7] : memref<16x128xf32, #tpu.memory_space<vmem>>, vector<16x128xf32>
    tpu.vector_store %arg5[%c0_6, %c0_7], %14 {strides = array<i32>} : memref<16x128xf32, #tpu.memory_space<vmem>>, vector<16x128xf32>,
    return
  }
  func.func @transform_0(%arg0: i32, %arg1: memref<1xf32, #tpu.memory_space<smem>>) -> (i32, i32) {
    %c0_i32 = arith.constant 0 : i32
    %c0_i32_0 = arith.constant 0 : i32
    return %arg0, %c0_i32 : i32, i32
  }
  func.func @transform_1(%arg0: i32, %arg1: memref<1xf32, #tpu.memory_space<smem>>) -> (i32, i32) {
    %c0_i32 = arith.constant 0 : i32
    %c0_i32_0 = arith.constant 0 : i32
    %c0_i32_1 = arith.constant 0 : i32
    return %c0_i32, %c0_i32_0 : i32, i32
  }
  func.func @transform_2(%arg0: i32, %arg1: memref<1xf32, #tpu.memory_space<smem>>) -> (i32, i32) {
    %c0_i32 = arith.constant 0 : i32
    %c0_i32_0 = arith.constant 0 : i32
    %c0_i32_1 = arith.constant 0 : i32
    return %c0_i32, %c0_i32_0 : i32, i32
  }
  func.func @transform_3(%arg0: i32, %arg1: memref<1xf32, #tpu.memory_space<smem>>) -> (i32, i32) {
    %c0_i32 = arith.constant 0 : i32
    %c0_i32_0 = arith.constant 0 : i32
    return %arg0, %c0_i32 : i32, i32
  }
}

</mosaic_0001>

<llo_original>
// kernel: tpu_custom_call.1
$region0: #{tpu_custom_call.1}
  #allocation0 [shape = 'u32[]', space=smem, size = 0x4, offset = 0x4, fixed_abs, tag = 'smem constant byte address 0x4 - core index']
  #allocation1 [shape = 'u32[144,128]{1,0:T(1,128)}', space=vmem, size = 0x12000, scoped, tag = 'internal scratch']
  #allocation2 [shape = 's32[1]{0}', space=sflag, size = 0x4, scoped, tag = 'scoped memory for tpu_custom_call.1']
  #allocation3 [shape = 'f32[1]{0:T(128)S(6)}', space=smem, size = 0x200, scoped, tag = 'prefetched SMEM operand 0']
  %s0 = inlined_call_operand.<no memory space> [shape: f32[1], index: 0, kind: input, shape index: {}]
  %s1 = inlined_call_operand.hbm [shape: f32[16,128], index: 1, kind: input, shape index: {}]
  %s2 = inlined_call_operand.vmem [shape: f32[1,128], index: 2, kind: input, shape index: {}]
  %s3 = inlined_call_operand.vmem [shape: f32[1,128], index: 3, kind: input, shape index: {}]
  %s4 = inlined_call_operand.hbm [shape: f32[16,128], index: 4, kind: output, shape index: {}]
  %s5 = sld [smem:[#allocation0]]
  $region26: #{tpu_custom_call.1} parent=0
    _
  %s7 = ssub.s32 1, %s5
  %s8 = scalar_select 0, %s7, %s5
  %9 = sst [smem:[#allocation3]] %s0
  $region1: #{tpu_custom_call.1} parent=0
    #allocation4 [shape = 'u8[8192]{0}', space=vmem, size = 0x2000, scoped, tag = 'input window, operand 1, single buffered']
    #allocation5 [shape = 's32[1]{0}', space=sflag, size = 0x4, scoped, tag = 'scoped memory for tpu_custom_call.1']
    #allocation6 [shape = 's32[1]{0}', space=sflag, size = 0x4, scoped, tag = 'scoped memory for tpu_custom_call.1']
    #allocation7 [shape = 'u8[8192]{0}', space=vmem, size = 0x2000, scoped, tag = 'output window, operand 0, single buffered']
    %10 = vsyncpa [#allocation5], 0
    %11 = vsyncpa [#allocation6], 0
    // Predicated region
    $region2: #{tpu_custom_call.1} parent=1 // pred_check
      _
    $region3: #{tpu_custom_call.1} parent=1 // pred_check_branch
      %13 = sbr.rel (0) target = $region5
    $region4: #{tpu_custom_call.1} parent=1 // pred_region
      %s15 = ssub.s32 256, 256
      %16 = vsyncadd [#allocation5], %s15
      %s17 = sshll.u32 [#allocation4], 4
      %s18 = int_to_ptr.vmem [resolvable:$true] %s17
      %23 = dma.hbm_to_vmem [thread:$0]  %s1, 256, %s18, [#allocation5], 128, 128, 8
    $region5: #{tpu_custom_call.1} parent=1 // pred_fallthru
      _
    // Predicated region
    $region6: #{tpu_custom_call.1} parent=1 // pred_check
      _
    $region7: #{tpu_custom_call.1} parent=1 // pred_check_branch
      %25 = sbr.rel (0) target = $region9
    $region8: #{tpu_custom_call.1} parent=1 // pred_region
      _
    $region9: #{tpu_custom_call.1} parent=1 // pred_fallthru
      _
    // Predicated region
    $region10: #{tpu_custom_call.1} parent=1 // pred_check
      _
    $region11: #{tpu_custom_call.1} parent=1 // pred_check_branch
      %27 = sbr.rel (0) target = $region13
    $region12: #{tpu_custom_call.1} parent=1 // pred_region
      _
    $region13: #{tpu_custom_call.1} parent=1 // pred_fallthru
      _
    // Predicated region
    $region14: #{tpu_custom_call.1} parent=1 // pred_check
      _
    $region15: #{tpu_custom_call.1} parent=1 // pred_check_branch
      %29 = sbr.rel (0) target = $region17
    $region16: #{tpu_custom_call.1} parent=1 // pred_region
      %30 = dma.done [#allocation5], 256
    $region17: #{tpu_custom_call.1} parent=1 // pred_fallthru
      _
    %s31 = sld [smem:[#allocation3]]
    %v32 = vld [vmem:[#allocation4] sm:$0xff]
    %v33 = vld [vmem:[#allocation4 + $0x8] sm:$0xff]
    %v34 = vstv %s31
    %v35 = vmul.f32 %v34, %v32
    %v36 = vmul.f32 %v34, %v33
    %v37 = vand.u32 2147483647, %v35
    %v38 = vand.u32 2147483647, %v36
    %v39 = vadd.f32 %v37, 1.0
    %v40 = vadd.f32 %v38, 1.0
    %v41 = vrcp.pop %v39
    %v42 = vrcp.pop %v40
    %v43 = vmul.f32 %v35, %v41
    %v44 = vmul.f32 %v36, %v42
    %v45 = vld [vmem:[%s2] sm:$0x1]
    %v47 = vlaneseq
    %v48 = vshrl.u32 %v47, 7
    %v49 = vsub.s32 0, %v48
    %v50 = vrot.slane %v45, %v49
    %v52 = vmul.f32 %v50, %v43
    %v53 = vmul.f32 %v50, %v44
    %v54 = vld [vmem:[%s3] sm:$0x1]
    %v56 = vlaneseq
    %v57 = vshrl.u32 %v56, 7
    %v58 = vsub.s32 0, %v57
    %v59 = vrot.slane %v54, %v58
    %v61 = vadd.f32 %v52, %v59
    %v62 = vadd.f32 %v53, %v59
    %63 = vst [vmem:[#allocation7] sm:$0xff] %v61
    %64 = vst [vmem:[#allocation7 + $0x8] sm:$0xff] %v62
    // Predicated region
    $region18: #{tpu_custom_call.1} parent=1 // pred_check
      _
    $region19: #{tpu_custom_call.1} parent=1 // pred_check_branch
      %66 = sbr.rel (0) target = $region21
    $region20: #{tpu_custom_call.1} parent=1 // pred_region
      %s68 = ssub.s32 256, 256
      %69 = vsyncadd [#allocation6], %s68
      %s70 = sshll.u32 [#allocation7], 4
      %s71 = int_to_ptr.vmem [resolvable:$true] %s70
      %76 = dma.vmem_to_hbm [thread:$0]  %s71, 256, %s4, [#allocation6], 128, 128, 8
    $region21: #{tpu_custom_call.1} parent=1 // pred_fallthru
      _
    // Predicated region
    $region22: #{tpu_custom_call.1} parent=1 // pred_check
      _
    $region23: #{tpu_custom_call.1} parent=1 // pred_check_branch
      %78 = sbr.rel (0) target = $region25
    $region24: #{tpu_custom_call.1} parent=1 // pred_region
      %79 = dma.done [#allocation6], 256
    $region25: #{tpu_custom_call.1} parent=1 // pred_fallthru
      _
    %80 = vsyncpa [#allocation5], 1
    %81 = vsyncpa [#allocation6], 1

</llo_original>
